<compile_context>
chip_gen: v7x
topology: tpu7x:2x2x1
jax: 0.10.0
libtpu: 0.0.40
codegen_flags: <defaults>
</compile_context>

<pallas_src>
import functools

import jax
import jax.numpy as jnp
from jax.experimental import pallas as pl
from jax.experimental.pallas import tpu as pltpu


def _fused_linear_kernel(w_ref, b_ref, x_ref, o_ref):
    # One MXU GEMM per batch tile, output already in final [tile_b, 16] layout.
    acc = jnp.dot(x_ref[...], w_ref[...], preferred_element_type=jnp.float32)
    o_ref[...] = (acc + b_ref[...].astype(jnp.float32)).astype(o_ref.dtype)


def _round_up(x: int, m: int) -> int:
    return ((x + m - 1) // m) * m


def _pick_tile_b(batch: int, in_features: int, itemsize: int) -> int:
    """Pick a batch tile that (a) fits a conservative double-buffered VMEM budget
    on every generation (v5e/v6e/v7x) and (b) yields multiple grid steps so the
    input prefetch / output writeback pipeline (and dual-TC sharding) engage."""
    # Lane padding: last dims are padded to 128 lanes in VMEM.
    in_pad = _round_up(max(in_features, 1), 128)
    out_pad = 128  # 16 output features pad to one full 128-lane tile
    bytes_per_row = (in_pad + out_pad) * itemsize
    budget = 12 * 1024 * 1024  # safely under v5e's 16 MiB scoped-VMEM default
    tile_cap = max(8, (budget // (2 * bytes_per_row)) // 8 * 8)

    # Aim for >= 4 grid steps (pipelining + megacore), but never below 8 sublanes.
    target = max(8, _round_up(-(-batch // 4), 8))

    tile_b = min(tile_cap, target, _round_up(batch, 8))
    if tile_b >= batch:
        # Single full-extent block (block dim == array dim satisfies tiling rule).
        return batch
    return tile_b  # multiple of 8; Pallas masks the partial last block.


@functools.partial(jax.jit)
def dhn_forward(x, w0, b0, w1, b1):
    """TestDHNArch forward: linear1(linear0(x)).

    x : [B, in_features]
    w0: [in_features, 16]   (transpose of PyTorch nn.Linear's [16, in_features])
    b0: [1, 16]
    w1: [16, 16]            (transpose of PyTorch layout)
    b1: [1, 16]
    returns [B, 16]
    """
    B, in_features = x.shape

    # Algebraic fusion (valid because there is no activation between the linears):
    #   (x @ w0 + b0) @ w1 + b1 == x @ (w0 @ w1) + (b0 @ w1 + b1)
    w_eff = jnp.dot(w0, w1, preferred_element_type=jnp.float32).astype(x.dtype)        # [in, 16]
    b_eff = (jnp.dot(b0, w1, preferred_element_type=jnp.float32) + b1).astype(x.dtype)  # [1, 16]

    tile_b = _pick_tile_b(B, in_features, jnp.dtype(x.dtype).itemsize)
    grid = (pl.cdiv(B, tile_b),)

    cost = pl.CostEstimate(
        flops=2 * B * in_features * 16 + B * 16,
        bytes_accessed=jnp.dtype(x.dtype).itemsize * (B * in_features + B * 16)
        + jnp.dtype(x.dtype).itemsize * (in_features * 16 + 16),
        transcendentals=0,
    )

    out = pl.pallas_call(
        _fused_linear_kernel,
        out_shape=jax.ShapeDtypeStruct((B, 16), x.dtype),
        grid_spec=pltpu.PrefetchScalarGridSpec(
            num_scalar_prefetch=0,
            grid=grid,
            in_specs=[
                pl.BlockSpec((in_features, 16), lambda i: (0, 0)),   # resident fused weight
                pl.BlockSpec((1, 16), lambda i: (0, 0)),             # resident fused bias
                pl.BlockSpec((tile_b, in_features), lambda i: (i, 0)),  # streamed native x tiles
            ],
            out_specs=pl.BlockSpec((tile_b, 16), lambda i: (i, 0)),  # final row-major layout
        ),
        compiler_params=pltpu.CompilerParams(
            dimension_semantics=("parallel",),
        ),
        cost_estimate=cost,
    )(w_eff, b_eff, x)

    return out


def init_params(key, in_features):
    # Deterministic synthetic init (shapes match nn.Linear(in_features,16), nn.Linear(16,16)).
    k0, k1, k2, k3 = jax.random.split(key, 4)
    bound0 = 1.0 / jnp.sqrt(in_features)
    bound1 = 1.0 / jnp.sqrt(16.0)
    # Stored as [in, out] (transpose of PyTorch's [out, in]).
    w0 = jax.random.uniform(k0, (in_features, 16), jnp.float32, -bound0, bound0)
    b0 = jax.random.uniform(k1, (1, 16), jnp.float32, -bound0, bound0)
    w1 = jax.random.uniform(k2, (16, 16), jnp.float32, -bound1, bound1)
    b1 = jax.random.uniform(k3, (1, 16), jnp.float32, -bound1, bound1)
    return w0, b0, w1, b1


def _reference(x, w0, b0, w1, b1):
    return (x @ w0 + b0) @ w1 + b1


if __name__ == "__main__":
    key = jax.random.PRNGKey(0)

    # Small single-block case (matches the module's intended tiny test sizes).
    in_features = 32
    batch = 8
    kx, kp, key = jax.random.split(key, 3)
    x = jax.random.normal(kx, (batch, in_features), jnp.float32)
    w0, b0, w1, b1 = init_params(kp, in_features)

    out = dhn_forward(x, w0, b0, w1, b1)
    jax.block_until_ready(out)
    ref = _reference(x, w0, b0, w1, b1)
    assert out.shape == (batch, 16)
    assert jnp.allclose(out, ref, atol=1e-4, rtol=1e-4)

    # Multi-block, non-tile-aligned case to exercise the pipelined grid + masking.
    in_features2 = 64
    batch2 = 300
    kx2, kp2 = jax.random.split(key)
    x2 = jax.random.normal(kx2, (batch2, in_features2), jnp.float32)
    w0b, b0b, w1b, b1b = init_params(kp2, in_features2)

    out2 = dhn_forward(x2, w0b, b0b, w1b, b1b)
    jax.block_until_ready(out2)
    ref2 = _reference(x2, w0b, b0b, w1b, b1b)
    assert out2.shape == (batch2, 16)
    assert jnp.allclose(out2, ref2, atol=1e-4, rtol=1e-4)

    print("KERNEL_OK")
</pallas_src>

<mosaic_0001>
module attributes {stable_mosaic.version = 11 : i64} {
  func.func @_fused_linear_kernel(%arg0: i32, %arg1: memref<32x16xf32, #tpu.memory_space<vmem>>, %arg2: memref<1x16xf32, #tpu.memory_space<vmem>>, %arg3: memref<8x32xf32, #tpu.memory_space<vmem>>, %arg4: memref<8x16xf32, #tpu.memory_space<vmem>>) attributes {dimension_semantics = [#tpu.dimension_semantics<parallel>], iteration_bounds = array<i64: 1>, scalar_prefetch = 0 : i64, scratch_operands = 0 : i64, tpu.core_type = #tpu.core_type<tc>, window_params = [{pipeline_mode = #tpu.pipeline_mode<synchronous>, transform_indices = @transform_0, window_bounds = array<i64: 32, 16>}, {pipeline_mode = #tpu.pipeline_mode<synchronous>, transform_indices = @transform_1, window_bounds = array<i64: 1, 16>}, {transform_indices = @transform_2, window_bounds = array<i64: 8, 32>}, {transform_indices = @transform_3, window_bounds = array<i64: 8, 16>}]} {
    %c0 = arith.constant 0 : index
    %c0_0 = arith.constant 0 : index
    %0 = vector.load %arg3[%c0, %c0_0] : memref<8x32xf32, #tpu.memory_space<vmem>>, vector<8x32xf32>
    %c0_1 = arith.constant 0 : index
    %c0_2 = arith.constant 0 : index
    %1 = vector.load %arg1[%c0_1, %c0_2] : memref<32x16xf32, #tpu.memory_space<vmem>>, vector<32x16xf32>
    %cst = arith.constant dense<0.000000e+00> : vector<8x16xf32>
    %2 = tpu.matmul %0, %1, %cst {dimension_numbers = #tpu.dot_dimension_numbers<[1], [0], [0], [1], [0, 0, 1, 1], [], []>} : vector<8x32xf32>, vector<32x16xf32>, vector<8x16xf32> -> vector<8x16xf32>
    %c0_3 = arith.constant 0 : index
    %c0_4 = arith.constant 0 : index
    %3 = vector.load %arg2[%c0_3, %c0_4] : memref<1x16xf32, #tpu.memory_space<vmem>>, vector<1x16xf32>
    %4 = vector.broadcast %3 : vector<1x16xf32> to vector<8x16xf32>
    %5 = arith.addf %2, %4 : vector<8x16xf32>
    %c0_5 = arith.constant 0 : index
    %c0_6 = arith.constant 0 : index
    %6 = vector.load %arg4[%c0_5, %c0_6] : memref<8x16xf32, #tpu.memory_space<vmem>>, vector<8x16xf32>
    tpu.vector_store %arg4[%c0_5, %c0_6], %5 {strides = array<i32>} : memref<8x16xf32, #tpu.memory_space<vmem>>, vector<8x16xf32>,
    return
  }
  func.func @transform_0(%arg0: i32) -> (i32, i32) {
    %c0_i32 = arith.constant 0 : i32
    %c0_i32_0 = arith.constant 0 : i32
    %c0_i32_1 = arith.constant 0 : i32
    return %c0_i32, %c0_i32_0 : i32, i32
  }
  func.func @transform_1(%arg0: i32) -> (i32, i32) {
    %c0_i32 = arith.constant 0 : i32
    %c0_i32_0 = arith.constant 0 : i32
    %c0_i32_1 = arith.constant 0 : i32
    return %c0_i32, %c0_i32_0 : i32, i32
  }
  func.func @transform_2(%arg0: i32) -> (i32, i32) {
    %c0_i32 = arith.constant 0 : i32
    %c0_i32_0 = arith.constant 0 : i32
    return %arg0, %c0_i32 : i32, i32
  }
  func.func @transform_3(%arg0: i32) -> (i32, i32) {
    %c0_i32 = arith.constant 0 : i32
    %c0_i32_0 = arith.constant 0 : i32
    return %arg0, %c0_i32 : i32, i32
  }
}

</mosaic_0001>

<llo_original>
// kernel: dhn_forward.1
$region0: #{dhn_forward.1}
  #allocation0 [shape = 'u32[]', space=smem, size = 0x4, offset = 0x4, fixed_abs, tag = 'smem constant byte address 0x4 - core index']
  #allocation1 [shape = 'u32[144,128]{1,0:T(1,128)}', space=vmem, size = 0x12000, scoped, tag = 'internal scratch']
  %s0 = inlined_call_operand.vmem [shape: f32[32,16], index: 0, kind: input, shape index: {}]
  %s1 = inlined_call_operand.vmem [shape: f32[1,16], index: 1, kind: input, shape index: {}]
  %s2 = inlined_call_operand.vmem [shape: f32[8,32], index: 2, kind: input, shape index: {}]
  %s3 = inlined_call_operand.hbm [shape: f32[8,16], index: 3, kind: output, shape index: {}]
  %s4 = sld [smem:[#allocation0]]
  $region22: #{dhn_forward.1} parent=0
    _
  %s6 = ssub.s32 1, %s4
  %s7 = scalar_select 0, %s6, %s4
  $region1: #{dhn_forward.1} parent=0
    #allocation2 [shape = 'u8[4096]{0}', space=vmem, size = 0x1000, scoped, tag = 'output window, operand 0, single buffered']
    #allocation3 [shape = 's32[1]{0}', space=sflag, size = 0x4, scoped, tag = 'scoped memory for dhn_forward.1']
    %8 = vsyncpa [#allocation3], 0
    // Predicated region
    $region2: #{dhn_forward.1} parent=1 // pred_check
      _
    $region3: #{dhn_forward.1} parent=1 // pred_check_branch
      %10 = sbr.rel (0) target = $region5
    $region4: #{dhn_forward.1} parent=1 // pred_region
      _
    $region5: #{dhn_forward.1} parent=1 // pred_fallthru
      _
    // Predicated region
    $region6: #{dhn_forward.1} parent=1 // pred_check
      _
    $region7: #{dhn_forward.1} parent=1 // pred_check_branch
      %12 = sbr.rel (0) target = $region9
    $region8: #{dhn_forward.1} parent=1 // pred_region
      _
    $region9: #{dhn_forward.1} parent=1 // pred_fallthru
      _
    // Predicated region
    $region10: #{dhn_forward.1} parent=1 // pred_check
      _
    $region11: #{dhn_forward.1} parent=1 // pred_check_branch
      %14 = sbr.rel (0) target = $region13
    $region12: #{dhn_forward.1} parent=1 // pred_region
      _
    $region13: #{dhn_forward.1} parent=1 // pred_fallthru
      _
    %v15 = vld [vmem:[%s2] sm:$0xff]
    %v16 = vld [vmem:[%s0] sm:$0xff]
    %v17 = vld [vmem:[%s0 + $0x8] sm:$0xff]
    %v18 = vld [vmem:[%s0 + $0x10] sm:$0xff]
    %v19 = vld [vmem:[%s0 + $0x18] sm:$0xff]
    %v20 = vld [vmem:[%s1] sm:$0x1]
    %v22 = vlaneseq
    %v23 = vshrl.u32 %v22, 7
    %v24 = vsub.s32 0, %v23
    %v25 = vrot.slane %v20, %v24
    %vm27 = vcmask 261120
    %v29 = vsel %vm27, %v15, 0
    %31 = vmatprep.subr.mxu0 0.0
    %32 = vmatpush1.msra.mxu0 %v16
    %33 = vmatprep.subr.mxu0 0.0
    %34 = vmatpush1.msra.mxu0 %v17
    %35 = vmatprep.subr.mxu0 0.0
    %36 = vmatpush1.msra.mxu0 %v18
    %37 = vmatprep.subr.mxu0 0.0
    %38 = vmatpush1.msra.mxu0 %v19
    %39 = vmatprep.subr.mxu0 0.0
    %40 = vmatpush1.msra.mxu0 0.0
    %41 = vmatprep.subr.mxu0 0.0
    %42 = vmatpush1.msra.mxu0 0.0
    %43 = vmatprep.subr.mxu0 0.0
    %44 = vmatpush1.msra.mxu0 0.0
    %45 = vmatprep.subr.mxu0 0.0
    %46 = vmatpush1.msra.mxu0 0.0
    %47 = vmatprep.subr.mxu0 0.0
    %48 = vmatpush1.msra.mxu0 0.0
    %49 = vmatprep.subr.mxu0 0.0
    %50 = vmatpush1.msra.mxu0 0.0
    %51 = vmatprep.subr.mxu0 0.0
    %52 = vmatpush1.msra.mxu0 0.0
    %53 = vmatprep.subr.mxu0 0.0
    %54 = vmatpush1.msra.mxu0 0.0
    %55 = vmatprep.subr.mxu0 0.0
    %56 = vmatpush1.msra.mxu0 0.0
    %57 = vmatprep.subr.mxu0 0.0
    %58 = vmatpush1.msra.mxu0 0.0
    %59 = vmatprep.subr.mxu0 0.0
    %60 = vmatpush1.msra.mxu0 0.0
    %61 = vmatprep.subr.mxu0 0.0
    %62 = vmatpush1.msra.mxu0 0.0
    %63 = vmatprep.subr.mxu0 0.0
    %64 = vmatpush1.msra.mxu0 0.0
    %65 = vmatprep.subr.mxu0 0.0
    %66 = vmatpush1.msra.mxu0 0.0
    %67 = vmatprep.subr.mxu0 0.0
    %68 = vmatpush1.msra.mxu0 0.0
    %69 = vmatprep.subr.mxu0 0.0
    %70 = vmatpush1.msra.mxu0 0.0
    %71 = vmatprep.subr.mxu0 0.0
    %72 = vmatpush1.msra.mxu0 0.0
    %73 = vmatprep.subr.mxu0 0.0
    %74 = vmatpush1.msra.mxu0 0.0
    %75 = vmatprep.subr.mxu0 0.0
    %76 = vmatpush1.msra.mxu0 0.0
    %77 = vmatprep.subr.mxu0 0.0
    %78 = vmatpush1.msra.mxu0 0.0
    %79 = vmatprep.subr.mxu0 0.0
    %80 = vmatpush1.msra.mxu0 0.0
    %81 = vmatprep.subr.mxu0 0.0
    %82 = vmatpush1.msra.mxu0 0.0
    %83 = vmatprep.subr.mxu0 0.0
    %84 = vmatpush1.msra.mxu0 0.0
    %85 = vmatprep.subr.mxu0 0.0
    %86 = vmatpush1.msra.mxu0 0.0
    %87 = vmatprep.subr.mxu0 0.0
    %88 = vmatpush1.msra.mxu0 0.0
    %89 = vmatprep.subr.mxu0 0.0
    %90 = vmatpush1.msra.mxu0 0.0
    %91 = vmatprep.subr.mxu0 0.0
    %92 = vmatpush1.msra.mxu0 0.0
    %93 = vmatprep.subr.mxu0 0.0
    %94 = vmatpush1.msra.mxu0 0.0
    %95 = vmatprep.mubr.f32.mxu0 0.0
    %96 = vmatmul.mubr.f32.gmra.mrb[0].mxu0 %v29
    %v97 = vpop.f32.mrb[0].mxu0
    %v98 = vadd.f32 %v25, %v97
    %v99 = vpop.f32.mrb[0].mxu0
    %100 = vdwg.mxu0
    %vm101 = vcmask 130048
    %102 = vst.msk [vmem:[#allocation2] sm:$0xff] %vm101, %v98
    // Predicated region
    $region14: #{dhn_forward.1} parent=1 // pred_check
      _
    $region15: #{dhn_forward.1} parent=1 // pred_check_branch
      %104 = sbr.rel (0) target = $region17
    $region16: #{dhn_forward.1} parent=1 // pred_region
      %s106 = ssub.s32 128, 128
      %107 = vsyncadd [#allocation3], %s106
      %s109 = sshll.u32 [#allocation2], 4
      %s110 = int_to_ptr.vmem [resolvable:$true] %s109
      %112 = dma.vmem_to_hbm [thread:$0]  %s110, 128, %s3, [#allocation3]
    $region17: #{dhn_forward.1} parent=1 // pred_fallthru
      _
    // Predicated region
    $region18: #{dhn_forward.1} parent=1 // pred_check
      _
    $region19: #{dhn_forward.1} parent=1 // pred_check_branch
      %114 = sbr.rel (0) target = $region21
    $region20: #{dhn_forward.1} parent=1 // pred_region
      %115 = dma.done [#allocation3], 128
    $region21: #{dhn_forward.1} parent=1 // pred_fallthru
      _
    %116 = vsyncpa [#allocation3], 1

</llo_original>
